<compile_context>
chip_gen: v5e
topology: v5e:2x2
jax: 0.10.0
libtpu: 0.0.40
codegen_flags: <defaults>
</compile_context>

<pallas_src>
import jax
import jax.numpy as jnp
from jax.experimental import pallas as pl
from jax.experimental.pallas import tpu as pltpu

_LANES = 128
_HIDDEN = 16
_MIN_SPLIT_ROWS = 512   # below this, a 2-step grid is pure overhead


def _round_up(x: int, m: int) -> int:
    return ((x + m - 1) // m) * m


def _slab_layout(sd_pad: int):
    """Row offsets of each weight inside the packed bf16 (R, 128) slab.

    Every section starts on a 16-row boundary (bf16 packs 2 rows / sublane):
      [0        : sd_pad)        w1  real data in [:state_dim, :16]
      [sd_pad   : sd_pad+128)    w2  real data in [:16, :16]
      [sd_pad+128 : sd_pad+256)  w3  real data in [:16, :action_dim]
    Zero padding keeps padded lanes of every activation exactly 0 through
    relu, so no column slicing is needed until the final store.
    """
    r_w1 = 0
    r_w2 = sd_pad
    r_w3 = r_w2 + _LANES
    r_total = r_w3 + _LANES
    return r_w1, r_w2, r_w3, r_total


def _build_weight_slab(params, state_dim: int, sd_pad: int, action_dim: int):
    r_w1, r_w2, r_w3, r_total = _slab_layout(sd_pad)
    h = _HIDDEN
    slab = jnp.zeros((r_total, _LANES), jnp.float32)
    slab = slab.at[r_w1:r_w1 + state_dim, :h].set(params["w1"])
    slab = slab.at[r_w2:r_w2 + h, :h].set(params["w2"])
    slab = slab.at[r_w3:r_w3 + h, :action_dim].set(params["w3"])
    return slab.astype(jnp.bfloat16)


def _build_bias_slab(params, action_dim: int):
    h = _HIDDEN
    b = jnp.zeros((8, _LANES), jnp.float32)          # 8 rows = one sublane tile
    b = b.at[0, :h].set(params["b1"].reshape(-1))
    b = b.at[1, :h].set(params["b2"].reshape(-1))
    b = b.at[2, :action_dim].set(params["b3"].reshape(-1))
    return b


def _make_mlp_kernel(sd_pad: int, action_dim: int, action_range: float):
    r_w1, r_w2, r_w3, _ = _slab_layout(sd_pad)

    def kernel(x_ref, w_ref, b_ref, o_ref):
        x = x_ref[...]                                   # (tb, sd_pad) bf16

        w1 = w_ref[r_w1:r_w1 + sd_pad, :]                # (sd_pad, 128) bf16
        w2 = w_ref[r_w2:r_w2 + _LANES, :]                # (128, 128)    bf16
        w3 = w_ref[r_w3:r_w3 + _LANES, :]                # (128, 128)    bf16
        b1 = b_ref[0:1, :]                               # (1, 128) f32
        b2 = b_ref[1:2, :]
        b3 = b_ref[2:3, :]

        # fc1 + relu: bf16 MXU, f32 accumulate / epilogue. Padded lanes stay 0.
        h1 = jnp.dot(x, w1, preferred_element_type=jnp.float32) + b1
        h1 = jnp.maximum(h1, 0.0)

        # fc2 + relu
        h2 = jnp.dot(h1.astype(jnp.bfloat16), w2,
                     preferred_element_type=jnp.float32) + b2
        h2 = jnp.maximum(h2, 0.0)

        # fc3 + tanh, scaled by action_range; store only the real action lanes.
        h3 = jnp.dot(h2.astype(jnp.bfloat16), w3,
                     preferred_element_type=jnp.float32) + b3
        act = jnp.tanh(h3) * action_range
        o_ref[...] = act[:, :action_dim].astype(o_ref.dtype)

    return kernel


def ddpg_actor_cont_forward(state, params, action_range: float, *, max_tile: int = 2048):
    """state: (B, state_dim).  params: dict of (in, out) weights / (1, out) biases."""
    B, state_dim = state.shape
    action_dim = params["w3"].shape[1]

    sd_pad = _round_up(max(state_dim, 1), 16)

    # Balanced tiling: n tiles of equal size, tb a multiple of 16 (bf16 sublanes).
    n = pl.cdiv(B, max_tile)
    if B >= _MIN_SPLIT_ROWS:
        n = max(n, 2)            # v7x: engage both TensorCores
    if n > 1 and (n % 2):
        n += 1                   # even step count balances the 2-TC split
    tb = _round_up(pl.cdiv(B, n), 16)
    b_pad = n * tb

    # Single pad op; cast matmul operand to bf16 (halves input DMA bytes too).
    x_pad = jnp.pad(state.astype(jnp.bfloat16),
                    ((0, b_pad - B), (0, sd_pad - state_dim)))

    w_slab = _build_weight_slab(params, state_dim, sd_pad, action_dim)
    b_slab = _build_bias_slab(params, action_dim)

    cost = pl.CostEstimate(
        flops=2 * b_pad * (sd_pad + 2 * _LANES) * _LANES,
        transcendentals=b_pad * _LANES,
        bytes_accessed=(2 * b_pad * sd_pad            # bf16 input
                        + 4 * b_pad * action_dim      # f32 narrow output
                        + 2 * w_slab.size + 4 * b_slab.size),
    )

    out = pl.pallas_call(
        _make_mlp_kernel(sd_pad, action_dim, action_range),
        out_shape=jax.ShapeDtypeStruct((b_pad, action_dim), jnp.float32),
        grid=(n,),
        in_specs=[
            pl.BlockSpec((tb, sd_pad), lambda i: (i, 0)),          # streamed tiles
            pl.BlockSpec(w_slab.shape, lambda i: (0, 0)),          # resident weights
            pl.BlockSpec(b_slab.shape, lambda i: (0, 0)),          # resident biases
        ],
        out_specs=pl.BlockSpec((tb, action_dim), lambda i: (i, 0)),  # narrow writeback
        compiler_params=pltpu.CompilerParams(
            dimension_semantics=("parallel",)),
        cost_estimate=cost,
    )(x_pad, w_slab, b_slab)

    return out[:B, :]


def init_params(key, state_dim, action_dim, hidden=_HIDDEN):
    """Deterministic synthetic init (shapes match nn.Linear, stored as (in, out))."""
    ks = jax.random.split(key, 6)

    def uni(k, shape, fan_in):
        bound = 1.0 / jnp.sqrt(fan_in)
        return jax.random.uniform(k, shape, jnp.float32, -bound, bound)

    return {
        "w1": uni(ks[0], (state_dim, hidden), state_dim),
        "b1": uni(ks[1], (1, hidden), state_dim),
        "w2": uni(ks[2], (hidden, hidden), hidden),
        "b2": uni(ks[3], (1, hidden), hidden),
        "w3": uni(ks[4], (hidden, action_dim), hidden),
        "b3": uni(ks[5], (1, action_dim), hidden),
    }


def reference_forward(state, params, action_range):
    a = jnp.maximum(state @ params["w1"] + params["b1"], 0.0)
    a = jnp.maximum(a @ params["w2"] + params["b2"], 0.0)
    return jnp.tanh(a @ params["w3"] + params["b3"]) * action_range


if __name__ == "__main__":
    key = jax.random.PRNGKey(0)
    k_param, k_state, k_state2 = jax.random.split(key, 3)

    state_dim = 3        # e.g. Pendulum-v1 observation dim
    action_dim = 2
    action_range = 2.0
    params = init_params(k_param, state_dim, action_dim)

    # Small, single-tile case.
    batch = 4
    state = jax.random.normal(k_state, (batch, state_dim), jnp.float32)
    out = jax.block_until_ready(ddpg_actor_cont_forward(state, params, action_range))
    ref = reference_forward(state, params, action_range)
    assert out.shape == (batch, action_dim)
    # bf16 matmul operands -> compare at a looser tolerance than exact f32.
    assert jnp.allclose(out, ref, atol=5e-2, rtol=5e-2), float(jnp.max(jnp.abs(out - ref)))

    # Awkward batch size: exercises balanced multi-step grid + row padding.
    batch2 = 600
    state2 = jax.random.normal(k_state2, (batch2, state_dim), jnp.float32)
    out2 = jax.block_until_ready(ddpg_actor_cont_forward(state2, params, action_range))
    ref2 = reference_forward(state2, params, action_range)
    assert out2.shape == (batch2, action_dim)
    assert jnp.allclose(out2, ref2, atol=5e-2, rtol=5e-2), float(jnp.max(jnp.abs(out2 - ref2)))

    print("KERNEL_OK")
</pallas_src>

<mosaic_0001>
module attributes {stable_mosaic.version = 11 : i64} {
  func.func @kernel(%arg0: i32, %arg1: memref<16x16xbf16, #tpu.memory_space<vmem>>, %arg2: memref<272x128xbf16, #tpu.memory_space<vmem>>, %arg3: memref<8x128xf32, #tpu.memory_space<vmem>>, %arg4: memref<16x2xf32, #tpu.memory_space<vmem>>) attributes {dimension_semantics = [#tpu.dimension_semantics<parallel>], iteration_bounds = array<i64: 1>, scalar_prefetch = 0 : i64, scratch_operands = 0 : i64, tpu.core_type = #tpu.core_type<tc>, window_params = [{transform_indices = @transform_0, window_bounds = array<i64: 16, 16>}, {pipeline_mode = #tpu.pipeline_mode<synchronous>, transform_indices = @transform_1, window_bounds = array<i64: 272, 128>}, {pipeline_mode = #tpu.pipeline_mode<synchronous>, transform_indices = @transform_2, window_bounds = array<i64: 8, 128>}, {transform_indices = @transform_3, window_bounds = array<i64: 16, 2>}]} {
    %c0 = arith.constant 0 : index
    %c0_0 = arith.constant 0 : index
    %0 = vector.load %arg1[%c0, %c0_0] : memref<16x16xbf16, #tpu.memory_space<vmem>>, vector<16x16xbf16>
    %c0_1 = arith.constant 0 : index
    %c0_2 = arith.constant 0 : index
    %1 = vector.load %arg2[%c0_1, %c0_2] : memref<272x128xbf16, #tpu.memory_space<vmem>>, vector<16x128xbf16>
    %c16 = arith.constant 16 : index
    %c0_3 = arith.constant 0 : index
    %2 = vector.load %arg2[%c16, %c0_3] : memref<272x128xbf16, #tpu.memory_space<vmem>>, vector<128x128xbf16>
    %c144 = arith.constant 144 : index
    %c0_4 = arith.constant 0 : index
    %3 = vector.load %arg2[%c144, %c0_4] : memref<272x128xbf16, #tpu.memory_space<vmem>>, vector<128x128xbf16>
    %c0_5 = arith.constant 0 : index
    %c0_6 = arith.constant 0 : index
    %4 = vector.load %arg3[%c0_5, %c0_6] : memref<8x128xf32, #tpu.memory_space<vmem>>, vector<1x128xf32>
    %c1 = arith.constant 1 : index
    %c0_7 = arith.constant 0 : index
    %5 = vector.load %arg3[%c1, %c0_7] : memref<8x128xf32, #tpu.memory_space<vmem>>, vector<1x128xf32>
    %c2 = arith.constant 2 : index
    %c0_8 = arith.constant 0 : index
    %6 = vector.load %arg3[%c2, %c0_8] : memref<8x128xf32, #tpu.memory_space<vmem>>, vector<1x128xf32>
    %cst = arith.constant dense<0.000000e+00> : vector<16x128xf32>
    %7 = tpu.matmul %0, %1, %cst {dimension_numbers = #tpu.dot_dimension_numbers<[1], [0], [0], [1], [0, 0, 1, 1], [], []>} : vector<16x16xbf16>, vector<16x128xbf16>, vector<16x128xf32> -> vector<16x128xf32>
    %8 = vector.broadcast %4 : vector<1x128xf32> to vector<16x128xf32>
    %9 = arith.addf %7, %8 : vector<16x128xf32>
    %cst_9 = arith.constant 0.000000e+00 : f32
    %10 = vector.broadcast %cst_9 : f32 to vector<16x128xf32>
    %11 = arith.maximumf %9, %10 : vector<16x128xf32>
    %12 = arith.truncf %11 : vector<16x128xf32> to vector<16x128xbf16>
    %cst_10 = arith.constant dense<0.000000e+00> : vector<16x128xf32>
    %13 = tpu.matmul %12, %2, %cst_10 {dimension_numbers = #tpu.dot_dimension_numbers<[1], [0], [0], [1], [0, 0, 1, 1], [], []>} : vector<16x128xbf16>, vector<128x128xbf16>, vector<16x128xf32> -> vector<16x128xf32>
    %14 = vector.broadcast %5 : vector<1x128xf32> to vector<16x128xf32>
    %15 = arith.addf %13, %14 : vector<16x128xf32>
    %cst_11 = arith.constant 0.000000e+00 : f32
    %16 = vector.broadcast %cst_11 : f32 to vector<16x128xf32>
    %17 = arith.maximumf %15, %16 : vector<16x128xf32>
    %18 = arith.truncf %17 : vector<16x128xf32> to vector<16x128xbf16>
    %cst_12 = arith.constant dense<0.000000e+00> : vector<16x128xf32>
    %19 = tpu.matmul %18, %3, %cst_12 {dimension_numbers = #tpu.dot_dimension_numbers<[1], [0], [0], [1], [0, 0, 1, 1], [], []>} : vector<16x128xbf16>, vector<128x128xbf16>, vector<16x128xf32> -> vector<16x128xf32>
    %20 = vector.broadcast %6 : vector<1x128xf32> to vector<16x128xf32>
    %21 = arith.addf %19, %20 : vector<16x128xf32>
    %22 = math.tanh %21 : vector<16x128xf32>
    %cst_13 = arith.constant 2.000000e+00 : f32
    %23 = vector.broadcast %cst_13 : f32 to vector<16x128xf32>
    %24 = arith.mulf %22, %23 : vector<16x128xf32>
    %25 = vector.extract_strided_slice %24 {offsets = [0, 0], sizes = [16, 2], strides = [1, 1]} : vector<16x128xf32> to vector<16x2xf32>
    %c0_14 = arith.constant 0 : index
    %c0_15 = arith.constant 0 : index
    %26 = vector.load %arg4[%c0_14, %c0_15] : memref<16x2xf32, #tpu.memory_space<vmem>>, vector<16x2xf32>
    tpu.vector_store %arg4[%c0_14, %c0_15], %25 {strides = array<i32>} : memref<16x2xf32, #tpu.memory_space<vmem>>, vector<16x2xf32>,
    return
  }
  func.func @transform_0(%arg0: i32) -> (i32, i32) {
    %c0_i32 = arith.constant 0 : i32
    %c0_i32_0 = arith.constant 0 : i32
    return %arg0, %c0_i32 : i32, i32
  }
  func.func @transform_1(%arg0: i32) -> (i32, i32) {
    %c0_i32 = arith.constant 0 : i32
    %c0_i32_0 = arith.constant 0 : i32
    %c0_i32_1 = arith.constant 0 : i32
    return %c0_i32, %c0_i32_0 : i32, i32
  }
  func.func @transform_2(%arg0: i32) -> (i32, i32) {
    %c0_i32 = arith.constant 0 : i32
    %c0_i32_0 = arith.constant 0 : i32
    %c0_i32_1 = arith.constant 0 : i32
    return %c0_i32, %c0_i32_0 : i32, i32
  }
  func.func @transform_3(%arg0: i32) -> (i32, i32) {
    %c0_i32 = arith.constant 0 : i32
    %c0_i32_0 = arith.constant 0 : i32
    return %arg0, %c0_i32 : i32, i32
  }
}

</mosaic_0001>

<llo_original>
// kernel: tpu_custom_call.1
$region0: #{tpu_custom_call.1}
  #allocation0 [shape = 'u32[]', space=smem, size = 0x4, offset = 0x4, fixed_abs, tag = 'smem constant byte address 0x4 - core index']
  #allocation1 [shape = 'u32[72,128]{1,0:T(1,128)}', space=vmem, size = 0x9000, scoped, tag = 'internal scratch']
  %s0 = inlined_call_operand.hbm [shape: bf16[16,16], index: 0, kind: input, shape index: {}]
  %s1 = inlined_call_operand.hbm [shape: bf16[272,128], index: 1, kind: input, shape index: {}]
  %s2 = inlined_call_operand.hbm [shape: f32[8,128], index: 2, kind: input, shape index: {}]
  %s3 = inlined_call_operand.vmem [shape: f32[16,2], index: 3, kind: output, shape index: {}]
  %s4 = sld [smem:[#allocation0]]
  $region34: #{tpu_custom_call.1} parent=0
    _
  %s6 = ssub.s32 1, %s4
  %s7 = scalar_select 0, %s6, %s4
  $region1: #{tpu_custom_call.1} parent=0
    #allocation2 [shape = 'u8[4096]{0}', space=vmem, size = 0x1000, scoped, tag = 'input window, operand 0, single buffered']
    #allocation3 [shape = 's32[1]{0}', space=sflag, size = 0x4, scoped, tag = 'scoped memory for tpu_custom_call.1']
    #allocation4 [shape = 'u8[69632]{0}', space=vmem, size = 0x11000, scoped, tag = 'input window, operand 1, single buffered']
    #allocation5 [shape = 's32[1]{0}', space=sflag, size = 0x4, scoped, tag = 'scoped memory for tpu_custom_call.1']
    #allocation6 [shape = 'u8[4096]{0}', space=vmem, size = 0x1000, scoped, tag = 'input window, operand 2, single buffered']
    %8 = vsyncpa [#allocation3], 0
    %9 = vsyncpa [#allocation5], 0
    // Predicated region
    $region2: #{tpu_custom_call.1} parent=1 // pred_check
      _
    $region3: #{tpu_custom_call.1} parent=1 // pred_check_branch
      %11 = sbr.rel (0) target = $region5
    $region4: #{tpu_custom_call.1} parent=1 // pred_region
      %13 = vsyncadd [#allocation3], 0
      %s14 = sshll.u32 %s0, 4
      %s15 = int_to_ptr.hbm [resolvable:$true] %s14
      %s16 = sshll.u32 [#allocation2], 4
      %s17 = int_to_ptr.vmem [resolvable:$true] %s16
      %22 = dma.hbm_to_vmem [thread:$0]  %s15, 128, %s17, [#allocation3], 64, 64, 4
    $region5: #{tpu_custom_call.1} parent=1 // pred_fallthru
      _
    // Predicated region
    $region6: #{tpu_custom_call.1} parent=1 // pred_check
      _
    $region7: #{tpu_custom_call.1} parent=1 // pred_check_branch
      %24 = sbr.rel (0) target = $region9
    $region8: #{tpu_custom_call.1} parent=1 // pred_region
      %26 = vsyncadd [#allocation5], 0
      %s27 = sshll.u32 %s1, 4
      %s28 = int_to_ptr.hbm [resolvable:$true] %s27
      %s29 = sshll.u32 [#allocation4], 4
      %s30 = int_to_ptr.vmem [resolvable:$true] %s29
      %35 = dma.hbm_to_vmem [thread:$0]  %s28, 2176, %s30, [#allocation5], 64, 64, 4
    $region9: #{tpu_custom_call.1} parent=1 // pred_fallthru
      _
    // Predicated region
    $region10: #{tpu_custom_call.1} parent=1 // pred_check
      _
    $region11: #{tpu_custom_call.1} parent=1 // pred_check_branch
      %37 = sbr.rel (0) target = $region13
    $region12: #{tpu_custom_call.1} parent=1 // pred_region
      %39 = vsyncadd [#allocation5], 0
      %s41 = sshll.u32 %s2, 4
      %s42 = int_to_ptr.hbm [resolvable:$true] %s41
      %s43 = sshll.u32 [#allocation6], 4
      %s44 = int_to_ptr.vmem [resolvable:$true] %s43
      %46 = dma.hbm_to_vmem [thread:$0]  %s42, 128, %s44, [#allocation5]
    $region13: #{tpu_custom_call.1} parent=1 // pred_fallthru
      _
    // Predicated region
    $region14: #{tpu_custom_call.1} parent=1 // pred_check
      _
    $region15: #{tpu_custom_call.1} parent=1 // pred_check_branch
      %48 = sbr.rel (0) target = $region17
    $region16: #{tpu_custom_call.1} parent=1 // pred_region
      %50 = dma.done [#allocation3], 128
    $region17: #{tpu_custom_call.1} parent=1 // pred_fallthru
      _
    // Predicated region
    $region18: #{tpu_custom_call.1} parent=1 // pred_check
      _
    $region19: #{tpu_custom_call.1} parent=1 // pred_check_branch
      %52 = sbr.rel (0) target = $region21
    $region20: #{tpu_custom_call.1} parent=1 // pred_region
      %54 = dma.done [#allocation5], 2176
    $region21: #{tpu_custom_call.1} parent=1 // pred_fallthru
      _
    // Predicated region
    $region22: #{tpu_custom_call.1} parent=1 // pred_check
      _
    $region23: #{tpu_custom_call.1} parent=1 // pred_check_branch
      %56 = sbr.rel (0) target = $region25
    $region24: #{tpu_custom_call.1} parent=1 // pred_region
      %58 = dma.done [#allocation5], 128
    $region25: #{tpu_custom_call.1} parent=1 // pred_fallthru
      _
    %v60 = vld [vmem:[#allocation2] sm:$0xf]
    %v61 = vld [vmem:[#allocation2 + $0x4] sm:$0xf]
    %v62 = vld [vmem:[#allocation4] sm:$0xf]
    %v63 = vld [vmem:[#allocation4 + $0x4] sm:$0xf]
    %v64 = vld [vmem:[#allocation4 + $0x8] sm:$0xf]
    %v65 = vld [vmem:[#allocation4 + $0xc] sm:$0xf]
    %v66 = vld [vmem:[#allocation4 + $0x10] sm:$0xf]
    %v67 = vld [vmem:[#allocation4 + $0x14] sm:$0xf]
    %v68 = vld [vmem:[#allocation4 + $0x18] sm:$0xf]
    %v69 = vld [vmem:[#allocation4 + $0x1c] sm:$0xf]
    %v70 = vld [vmem:[#allocation4 + $0x20] sm:$0xf]
    %v71 = vld [vmem:[#allocation4 + $0x24] sm:$0xf]
    %v72 = vld [vmem:[#allocation4 + $0x28] sm:$0xf]
    %v73 = vld [vmem:[#allocation4 + $0x2c] sm:$0xf]
    %v74 = vld [vmem:[#allocation4 + $0x30] sm:$0xf]
    %v75 = vld [vmem:[#allocation4 + $0x34] sm:$0xf]
    %v76 = vld [vmem:[#allocation4 + $0x38] sm:$0xf]
    %v77 = vld [vmem:[#allocation4 + $0x3c] sm:$0xf]
    %v78 = vld [vmem:[#allocation4 + $0x40] sm:$0xf]
    %v79 = vld [vmem:[#allocation4 + $0x44] sm:$0xf]
    %v80 = vld [vmem:[#allocation4 + $0x48] sm:$0xf]
    %v81 = vld [vmem:[#allocation4 + $0x4c] sm:$0xf]
    %v82 = vld [vmem:[#allocation4 + $0x50] sm:$0xf]
    %v83 = vld [vmem:[#allocation4 + $0x54] sm:$0xf]
    %v84 = vld [vmem:[#allocation4 + $0x58] sm:$0xf]
    %v85 = vld [vmem:[#allocation4 + $0x5c] sm:$0xf]
    %v86 = vld [vmem:[#allocation4 + $0x60] sm:$0xf]
    %v87 = vld [vmem:[#allocation4 + $0x64] sm:$0xf]
    %v88 = vld [vmem:[#allocation4 + $0x68] sm:$0xf]
    %v89 = vld [vmem:[#allocation4 + $0x6c] sm:$0xf]
    %v90 = vld [vmem:[#allocation4 + $0x70] sm:$0xf]
    %v91 = vld [vmem:[#allocation4 + $0x74] sm:$0xf]
    %v92 = vld [vmem:[#allocation4 + $0x78] sm:$0xf]
    %v93 = vld [vmem:[#allocation4 + $0x7c] sm:$0xf]
    %v94 = vld [vmem:[#allocation4 + $0x80] sm:$0xf]
    %v95 = vld [vmem:[#allocation4 + $0x84] sm:$0xf]
    %v96 = vld [vmem:[#allocation6] sm:$0x1]
    %v97 = vld [vmem:[#allocation6 + $0x1] sm:$0x1]
    %v98 = vld [vmem:[#allocation6 + $0x2] sm:$0x1]
    %v99 = vperm.slane %v96, 0
    %v102 = vunpack.c.l.b16 %v60
    %v103 = vunpack.c.l.b16 %v61
    %v104 = vpack.c.b16 %v103, %v102
    %v107 = vunpack.c.l.b16 %v62
    %v108 = vunpack.c.l.b16 %v63
    %v109 = vpack.c.b16 %v108, %v107
    %vm111 = vcmask 130048
    %v113 = vsel %vm111, %v104, 0
    %115 = vmatpush.bf16.msra.mxu0 0
    %116 = vmatpush.bf16.msra.mxu0 0
    %117 = vmatpush.bf16.msra.mxu0 0
    %118 = vmatpush.bf16.msra.mxu0 0
    %119 = vmatpush.bf16.msra.mxu0 0
    %120 = vmatpush.bf16.msra.mxu0 0
    %121 = vmatpush.bf16.msra.mxu0 0
    %122 = vmatpush.bf16.msra.mxu0 %v109
    %123 = vmatmul.bf16.gmra.mxu0 %v113
    %v124 = vpop.f32.mrf.mxu0
    %v125 = vadd.f32 %v99, %v124
    %v126 = vpop.f32.mrf.mxu0
    %v127 = vadd.f32 %v99, %v126
    %128 = vdwg.mxu0
    %v129 = vmax.f32 %v125, 0.0
    %v130 = vmax.f32 %v127, 0.0
    %v131 = vpack.c.bf16 %v130, %v129
    %v132 = vperm.slane %v97, 0
    %v149 = vunpack.c.l.b16 %v64
    %v150 = vunpack.c.l.b16 %v65
    %v151 = vunpack.c.l.b16 %v66
    %v152 = vunpack.c.l.b16 %v67
    %v153 = vunpack.c.l.b16 %v68
    %v154 = vunpack.c.l.b16 %v69
    %v155 = vunpack.c.l.b16 %v70
    %v156 = vunpack.c.l.b16 %v71
    %v157 = vunpack.c.l.b16 %v72
    %v158 = vunpack.c.l.b16 %v73
    %v159 = vunpack.c.l.b16 %v74
    %v160 = vunpack.c.l.b16 %v75
    %v161 = vunpack.c.l.b16 %v76
    %v162 = vunpack.c.l.b16 %v77
    %v163 = vunpack.c.l.b16 %v78
    %v164 = vunpack.c.l.b16 %v79
    %v165 = vpack.c.b16 %v150, %v149
    %v166 = vpack.c.b16 %v152, %v151
    %v167 = vpack.c.b16 %v154, %v153
    %v168 = vpack.c.b16 %v156, %v155
    %v169 = vpack.c.b16 %v158, %v157
    %v170 = vpack.c.b16 %v160, %v159
    %v171 = vpack.c.b16 %v162, %v161
    %v172 = vpack.c.b16 %v164, %v163
    %181 = vmatpush.bf16.msra.mxu0 %v172
    %182 = vmatpush.bf16.msra.mxu0 %v171
    %183 = vmatpush.bf16.msra.mxu0 %v170
    %184 = vmatpush.bf16.msra.mxu0 %v169
    %185 = vmatpush.bf16.msra.mxu0 %v168
    %186 = vmatpush.bf16.msra.mxu0 %v167
    %187 = vmatpush.bf16.msra.mxu0 %v166
    %188 = vmatpush.bf16.msra.mxu0 %v165
    %189 = vmatmul.bf16.gmra.mxu0 %v131
    %v190 = vpop.f32.mrf.mxu0
    %v191 = vadd.f32 %v132, %v190
    %v192 = vpop.f32.mrf.mxu0
    %v193 = vadd.f32 %v132, %v192
    %194 = vdwg.mxu0
    %v195 = vmax.f32 %v191, 0.0
    %v196 = vmax.f32 %v193, 0.0
    %v197 = vpack.c.bf16 %v196, %v195
    %v198 = vperm.slane %v98, 0
    %v215 = vunpack.c.l.b16 %v80
    %v216 = vunpack.c.l.b16 %v81
    %v217 = vunpack.c.l.b16 %v82
    %v218 = vunpack.c.l.b16 %v83
    %v219 = vunpack.c.l.b16 %v84
    %v220 = vunpack.c.l.b16 %v85
    %v221 = vunpack.c.l.b16 %v86
    %v222 = vunpack.c.l.b16 %v87
    %v223 = vunpack.c.l.b16 %v88
    %v224 = vunpack.c.l.b16 %v89
    %v225 = vunpack.c.l.b16 %v90
    %v226 = vunpack.c.l.b16 %v91
    %v227 = vunpack.c.l.b16 %v92
    %v228 = vunpack.c.l.b16 %v93
    %v229 = vunpack.c.l.b16 %v94
    %v230 = vunpack.c.l.b16 %v95
    %v231 = vpack.c.b16 %v216, %v215
    %v232 = vpack.c.b16 %v218, %v217
    %v233 = vpack.c.b16 %v220, %v219
    %v234 = vpack.c.b16 %v222, %v221
    %v235 = vpack.c.b16 %v224, %v223
    %v236 = vpack.c.b16 %v226, %v225
    %v237 = vpack.c.b16 %v228, %v227
    %v238 = vpack.c.b16 %v230, %v229
    %247 = vmatpush.bf16.msra.mxu0 %v238
    %248 = vmatpush.bf16.msra.mxu0 %v237
    %249 = vmatpush.bf16.msra.mxu0 %v236
    %250 = vmatpush.bf16.msra.mxu0 %v235
    %251 = vmatpush.bf16.msra.mxu0 %v234
    %252 = vmatpush.bf16.msra.mxu0 %v233
    %253 = vmatpush.bf16.msra.mxu0 %v232
    %254 = vmatpush.bf16.msra.mxu0 %v231
    %255 = vmatmul.bf16.gmra.mxu0 %v197
    %v256 = vpop.f32.mrf.mxu0
    %v257 = vadd.f32 %v198, %v256
    %v258 = vpop.f32.mrf.mxu0
    %v259 = vadd.f32 %v198, %v258
    %260 = vdwg.mxu0
    %v261 = vtanh.pop %v257
    %v262 = vtanh.pop %v259
    %v263 = vmul.f32 %v261, 2.0
    %v264 = vmul.f32 %v262, 2.0
    %vm265 = vcmask 15360
    %266 = vst.msk [vmem:[%s3] sm:$0xff] %vm265, %v263
    %267 = vst.msk [vmem:[%s3 + $0x8] sm:$0xff] %vm265, %v264
    // Predicated region
    $region26: #{tpu_custom_call.1} parent=1 // pred_check
      _
    $region27: #{tpu_custom_call.1} parent=1 // pred_check_branch
      %269 = sbr.rel (0) target = $region29
    $region28: #{tpu_custom_call.1} parent=1 // pred_region
      _
    $region29: #{tpu_custom_call.1} parent=1 // pred_fallthru
      _
    // Predicated region
    $region30: #{tpu_custom_call.1} parent=1 // pred_check
      _
    $region31: #{tpu_custom_call.1} parent=1 // pred_check_branch
      %271 = sbr.rel (0) target = $region33
    $region32: #{tpu_custom_call.1} parent=1 // pred_region
      _
    $region33: #{tpu_custom_call.1} parent=1 // pred_fallthru
      _
    %272 = vsyncpa [#allocation3], 1
    %273 = vsyncpa [#allocation5], 1

</llo_original>
